<compile_context>
chip_gen: v7x
topology: tpu7x:2x2x1
jax: 0.10.0
libtpu: 0.0.40
codegen_flags: <defaults>
</compile_context>

<pallas_src>
import jax
import jax.numpy as jnp
from jax.experimental import pallas as pl
from jax.experimental.pallas import tpu as pltpu


def _copy_kernel(x_ref, o_ref):
    # Pure passthrough of the current (tm, D) tile: VMEM load -> VMEM store.
    o_ref[...] = x_ref[...]


def _choose_row_tile(M, D, itemsize):
    """Pick a row tile tm such that:
       - (tm, D) is a legal TPU block (tm % 8 == 0 or tm == M; D is full dim),
       - M % tm == 0,
       - one block stays within a ~4 MiB budget (safe with double buffering
         for input + output on every TPU generation, incl. v7x's 64 MiB VMEM).
    """
    if M % 8 != 0:
        return M  # tiny / ragged: single full-extent block is always legal
    budget_bytes = 4 * 1024 * 1024
    tm = max(8, min(M, budget_bytes // max(1, D * itemsize)))
    tm = (tm // 8) * 8
    while tm > 8 and M % tm != 0:
        tm -= 8
    if tm < 8 or M % tm != 0:
        return M
    return tm


def _identity_copy(x):
    """Tiled Pallas passthrough copy of an arbitrary-rank array."""
    orig_shape = x.shape
    if x.ndim == 0:
        x2 = x.reshape(1, 1)
    elif x.ndim == 1:
        x2 = x.reshape(1, x.shape[0])
    else:
        # Collapse leading dims; keep the last (lane) dim contiguous so loads
        # and stores stay lane-dense.
        x2 = x.reshape(-1, x.shape[-1])

    M, D = x2.shape
    itemsize = jnp.dtype(x2.dtype).itemsize
    tm = _choose_row_tile(M, D, itemsize)
    grid = (M // tm,)

    out = pl.pallas_call(
        _copy_kernel,
        out_shape=jax.ShapeDtypeStruct((M, D), x2.dtype),
        grid=grid,
        in_specs=[pl.BlockSpec((tm, D), lambda i: (i, 0))],
        out_specs=pl.BlockSpec((tm, D), lambda i: (i, 0)),
        compiler_params=pltpu.CompilerParams(
            dimension_semantics=("parallel",),
        ),
        cost_estimate=pl.CostEstimate(
            flops=0,
            transcendentals=0,
            bytes_accessed=2 * M * D * itemsize,
        ),
    )(x2)
    return out.reshape(orig_shape)


def mul_forward(q, k):
    """Pallas equivalent of Mul.forward(q, k) -> (q, k)."""
    return _identity_copy(q), _identity_copy(k)


if __name__ == "__main__":
    # Small shapes consistent with how Mul is used inside ViT attention:
    # (batch, heads, seq, head_dim) = (2, 4, 8, 32).
    key = jax.random.PRNGKey(0)
    kq, kk = jax.random.split(key)
    q = jax.random.normal(kq, (2, 4, 8, 32), dtype=jnp.float32)
    k = jax.random.normal(kk, (2, 4, 8, 32), dtype=jnp.float32)

    q_out, k_out = mul_forward(q, k)
    q_out = jax.block_until_ready(q_out)
    k_out = jax.block_until_ready(k_out)

    # forward(q, k) must return (q, k) unchanged.
    assert q_out.shape == q.shape and k_out.shape == k.shape
    assert q_out.dtype == q.dtype and k_out.dtype == k.dtype
    assert jnp.array_equal(q_out, q)
    assert jnp.array_equal(k_out, k)
    print("KERNEL_OK")
</pallas_src>

<mosaic_0001>
module attributes {stable_mosaic.version = 11 : i64} {
  func.func @_copy_kernel(%arg0: i32, %arg1: memref<64x32xf32, #tpu.memory_space<vmem>>, %arg2: memref<64x32xf32, #tpu.memory_space<vmem>>) attributes {dimension_semantics = [#tpu.dimension_semantics<parallel>], iteration_bounds = array<i64: 1>, scalar_prefetch = 0 : i64, scratch_operands = 0 : i64, tpu.core_type = #tpu.core_type<tc>, window_params = [{transform_indices = @transform_0, window_bounds = array<i64: 64, 32>}, {transform_indices = @transform_1, window_bounds = array<i64: 64, 32>}]} {
    %c0 = arith.constant 0 : index
    %c0_0 = arith.constant 0 : index
    %0 = vector.load %arg1[%c0, %c0_0] : memref<64x32xf32, #tpu.memory_space<vmem>>, vector<64x32xf32>
    %c0_1 = arith.constant 0 : index
    %c0_2 = arith.constant 0 : index
    %1 = vector.load %arg2[%c0_1, %c0_2] : memref<64x32xf32, #tpu.memory_space<vmem>>, vector<64x32xf32>
    tpu.vector_store %arg2[%c0_1, %c0_2], %0 {strides = array<i32>} : memref<64x32xf32, #tpu.memory_space<vmem>>, vector<64x32xf32>,
    return
  }
  func.func @transform_0(%arg0: i32) -> (i32, i32) {
    %c0_i32 = arith.constant 0 : i32
    %c0_i32_0 = arith.constant 0 : i32
    return %arg0, %c0_i32 : i32, i32
  }
  func.func @transform_1(%arg0: i32) -> (i32, i32) {
    %c0_i32 = arith.constant 0 : i32
    %c0_i32_0 = arith.constant 0 : i32
    return %arg0, %c0_i32 : i32, i32
  }
}

</mosaic_0001>

<llo_original>
// kernel: tpu_custom_call.1
$region0: #{tpu_custom_call.1}
  #allocation0 [shape = 'u32[]', space=smem, size = 0x4, offset = 0x4, fixed_abs, tag = 'smem constant byte address 0x4 - core index']
  #allocation1 [shape = 'u32[144,128]{1,0:T(1,128)}', space=vmem, size = 0x12000, scoped, tag = 'internal scratch']
  %s0 = inlined_call_operand.vmem [shape: f32[64,32], index: 0, kind: input, shape index: {}]
  %s1 = inlined_call_operand.vmem [shape: f32[64,32], index: 1, kind: output, shape index: {}]
  %s2 = sld [smem:[#allocation0]]
  $region14: #{tpu_custom_call.1} parent=0
    _
  %s4 = ssub.s32 1, %s2
  %s5 = scalar_select 0, %s4, %s2
  // Predicated region
  $region2: #{tpu_custom_call.1} parent=0 // pred_check
    _
  $region3: #{tpu_custom_call.1} parent=0 // pred_check_branch
    %7 = sbr.rel (0) target = $region5
  $region4: #{tpu_custom_call.1} parent=0 // pred_region
    _
  $region5: #{tpu_custom_call.1} parent=0 // pred_fallthru
    _
  %v8 = vld [vmem:[%s0] sm:$0xff]
  %v9 = vld [vmem:[%s0 + $0x8] sm:$0xff]
  %v10 = vld [vmem:[%s0 + $0x10] sm:$0xff]
  %v11 = vld [vmem:[%s0 + $0x18] sm:$0xff]
  %v12 = vld [vmem:[%s0 + $0x20] sm:$0xff]
  %v13 = vld [vmem:[%s0 + $0x28] sm:$0xff]
  %v14 = vld [vmem:[%s0 + $0x30] sm:$0xff]
  %v15 = vld [vmem:[%s0 + $0x38] sm:$0xff]
  %vm16 = vcmask 261120
  %17 = vst.msk [vmem:[%s1] sm:$0xff] %vm16, %v8
  %18 = vst.msk [vmem:[%s1 + $0x8] sm:$0xff] %vm16, %v9
  %19 = vst.msk [vmem:[%s1 + $0x10] sm:$0xff] %vm16, %v10
  %20 = vst.msk [vmem:[%s1 + $0x18] sm:$0xff] %vm16, %v11
  %21 = vst.msk [vmem:[%s1 + $0x20] sm:$0xff] %vm16, %v12
  %22 = vst.msk [vmem:[%s1 + $0x28] sm:$0xff] %vm16, %v13
  %23 = vst.msk [vmem:[%s1 + $0x30] sm:$0xff] %vm16, %v14
  %24 = vst.msk [vmem:[%s1 + $0x38] sm:$0xff] %vm16, %v15
  // Predicated region
  $region6: #{tpu_custom_call.1} parent=0 // pred_check
    _
  $region7: #{tpu_custom_call.1} parent=0 // pred_check_branch
    %26 = sbr.rel (0) target = $region9
  $region8: #{tpu_custom_call.1} parent=0 // pred_region
    _
  $region9: #{tpu_custom_call.1} parent=0 // pred_fallthru
    _
  // Predicated region
  $region10: #{tpu_custom_call.1} parent=0 // pred_check
    _
  $region11: #{tpu_custom_call.1} parent=0 // pred_check_branch
    %28 = sbr.rel (0) target = $region13
  $region12: #{tpu_custom_call.1} parent=0 // pred_region
    _
  $region13: #{tpu_custom_call.1} parent=0 // pred_fallthru
    _

</llo_original>
